<compile_context>
chip_gen: v6e
topology: v6e:2x2x1
jax: 0.10.0
libtpu: 0.0.40
codegen_flags: <defaults>
</compile_context>

<pallas_src>
import jax
import jax.numpy as jnp
from jax.experimental import pallas as pl
from jax.experimental.pallas import tpu as pltpu

_LANE = 128
_SUBLANE = 8


def _round_up(n, m):
    return ((n + m - 1) // m) * m


def mlp_kernel(x_ref, w1_ref, b1_ref, w2_ref, b2_ref, o_ref):
    x = x_ref[...]                     # [bm, I]   (I = input_size = 3)

    # fc1 on the MXU: tiny K is padded/masked internally by Mosaic; keeps lane-broadcast
    # work off the 2-XLU v6e/v7x critical slot (MXU has plenty of slack here).
    # Hidden dim is zero-padded to 128 lanes so h and the fc2 contraction are lane-dense.
    h = jnp.dot(x, w1_ref[...], preferred_element_type=jnp.float32) + b1_ref[...]
    h = jnp.maximum(h, 0.0)            # ReLU

    # Dropout(p=0.3): identity in eval/inference mode.
    # TODO(synk): training-mode dropout (pltpu.prng_seed/prng_random_bits mask +
    # 1/(1-p) scaling) not implemented; this forward matches model.eval().

    # fc2 on the MXU: [bm, Hp] @ [Hp, C] with C = num_classes (=3) real columns only,
    # so the HBM store is narrow.  The masked store this implies is negligible: the
    # kernel is DMA/step-overhead bound, not store-slot bound.
    # (v5e lever: casting h / w2 to bf16 here cuts MXU passes ~3-4x; kept f32 for
    #  exact parity with the PyTorch float32 forward.)
    out = jnp.dot(h, w2_ref[...], preferred_element_type=jnp.float32) + b2_ref[...]
    o_ref[...] = out.astype(o_ref.dtype)


def _pad_params(w1, b1, w2, b2):
    """Zero-pad the hidden dim to a multiple of 128 (VMEM lane-dense intermediates).

    Zero padding is exact: padded w1 cols / b1 entries give h = relu(0) = 0 and padded
    w2 rows contribute 0 to the logits.  num_classes is NOT padded (narrow HBM output).
    """
    I, H = w1.shape
    C = w2.shape[1]
    Hp = _round_up(H, _LANE)
    w1p = jnp.zeros((I, Hp), jnp.float32).at[:, :H].set(w1.astype(jnp.float32))
    b1p = jnp.zeros((1, Hp), jnp.float32).at[:, :H].set(
        jnp.asarray(b1, jnp.float32).reshape(1, H))
    w2p = jnp.zeros((Hp, C), jnp.float32).at[:H, :].set(w2.astype(jnp.float32))
    b2p = jnp.asarray(b2, jnp.float32).reshape(1, C)
    return w1p, b1p, w2p, b2p


def glucose_classifier_forward(x, w1, b1, w2, b2, *, max_block_b=4096,
                               batched_threshold=1024):
    """x: [B, input_size] f32; returns logits [B, num_classes] f32 (eval-mode forward)."""
    B, I = x.shape
    H = w1.shape[1]
    C = w2.shape[1]
    w1p, b1p, w2p, b2p = _pad_params(w1, b1, w2, b2)
    Hp = w1p.shape[1]

    if B >= batched_threshold:
        # Batched path: grid over the batch axis only.  Weight index_maps always return
        # (0, 0) so weights stay VMEM-resident; only x / out DMA scales with batch.
        # Keep >= 2 "parallel" steps (v7x's two TensorCores split the axis); bm is
        # chosen adaptively so batch padding waste is < 8 rows per step.
        # VMEM @ bm=4096: x block (lane-padded 3->128) 2 MB + out block 2 MB, each
        # double-buffered, + ~4 MB intermediates => ~12 MB, under the 32 MiB scoped
        # default on v5e/v6e/v7x.
        n_steps = max(2, pl.cdiv(B, max_block_b))
        bm = _round_up(pl.cdiv(B, n_steps), _SUBLANE)
        Bp = n_steps * bm
        xp = x if Bp == B else jnp.zeros((Bp, I), x.dtype).at[:B, :].set(x)
        grid = (n_steps,)
        in_specs = [
            pl.BlockSpec((bm, I), lambda i: (i, 0)),
            pl.BlockSpec((I, Hp), lambda i: (0, 0)),
            pl.BlockSpec((1, Hp), lambda i: (0, 0)),
            pl.BlockSpec((Hp, C), lambda i: (0, 0)),
            pl.BlockSpec((1, C), lambda i: (0, 0)),
        ]
        out_specs = pl.BlockSpec((bm, C), lambda i: (i, 0))
        compiler_params = pltpu.CompilerParams(dimension_semantics=("parallel",))
    else:
        # Small-batch path: one grid step, whole arrays as single blocks (full-extent
        # blocks are exempt from the (8,128) divisibility rule).  Entirely launch/DMA
        # overhead bound; extra grid steps would only add ~0.35 us each of fixed cost.
        Bp = B
        xp = x
        grid = None
        in_specs = [
            pl.BlockSpec(xp.shape, lambda: (0, 0)),
            pl.BlockSpec(w1p.shape, lambda: (0, 0)),
            pl.BlockSpec(b1p.shape, lambda: (0, 0)),
            pl.BlockSpec(w2p.shape, lambda: (0, 0)),
            pl.BlockSpec(b2p.shape, lambda: (0, 0)),
        ]
        out_specs = pl.BlockSpec((Bp, C), lambda: (0, 0))
        compiler_params = None

    # Advisory hint for XLA scheduling: real (non-padded) work and HBM bytes.
    flops = 2 * B * (I * H + H * C)
    bytes_accessed = 4 * (B * I + I * H + H + H * C + C + B * C)
    cost = pl.CostEstimate(flops=flops, transcendentals=0,
                           bytes_accessed=bytes_accessed)

    kwargs = dict(
        out_shape=jax.ShapeDtypeStruct((Bp, C), jnp.float32),
        in_specs=in_specs,
        out_specs=out_specs,
        cost_estimate=cost,
    )
    if grid is not None:
        kwargs["grid"] = grid
    if compiler_params is not None:
        kwargs["compiler_params"] = compiler_params

    out = pl.pallas_call(mlp_kernel, **kwargs)(xp, w1p, b1p, w2p, b2p)
    return out if Bp == B else out[:B, :]


def init_params(key, input_size=3, hidden_size=64, num_classes=3):
    """Deterministic init mimicking nn.Linear's uniform(-1/sqrt(fan_in), 1/sqrt(fan_in)).

    Weights stored as [in, out] so the kernel computes x @ W (== PyTorch x @ W.T)."""
    k1, k2, k3, k4 = jax.random.split(key, 4)
    bound1 = 1.0 / (input_size ** 0.5)
    bound2 = 1.0 / (hidden_size ** 0.5)
    w1 = jax.random.uniform(k1, (input_size, hidden_size), jnp.float32, -bound1, bound1)
    b1 = jax.random.uniform(k2, (hidden_size,), jnp.float32, -bound1, bound1)
    w2 = jax.random.uniform(k3, (hidden_size, num_classes), jnp.float32, -bound2, bound2)
    b2 = jax.random.uniform(k4, (num_classes,), jnp.float32, -bound2, bound2)
    return w1, b1, w2, b2


if __name__ == "__main__":
    key = jax.random.PRNGKey(0)
    k_x, k_xb, k_p = jax.random.split(key, 3)

    input_size, hidden_size, num_classes = 3, 64, 3
    w1, b1, w2, b2 = init_params(k_p, input_size, hidden_size, num_classes)

    def ref_forward(xx):
        return jnp.maximum(xx @ w1 + b1.reshape(1, -1), 0.0) @ w2 + b2.reshape(1, -1)

    # Small-batch path (single grid step, whole-array blocks).
    x_small = jax.random.normal(k_x, (8, input_size), jnp.float32)
    out_small = jax.block_until_ready(glucose_classifier_forward(x_small, w1, b1, w2, b2))
    assert out_small.shape == (8, num_classes)
    assert jnp.allclose(out_small, ref_forward(x_small), atol=1e-3, rtol=1e-3)

    # Batched path: 2-step "parallel" grid (v7x's two TCs split it), ragged batch to
    # exercise the sublane-only zero-pad and the narrow (num_classes-wide) HBM output.
    x_big = jax.random.normal(k_xb, (2500, input_size), jnp.float32)
    out_big = jax.block_until_ready(glucose_classifier_forward(x_big, w1, b1, w2, b2))
    assert out_big.shape == (2500, num_classes)
    assert jnp.allclose(out_big, ref_forward(x_big), atol=1e-3, rtol=1e-3)

    print("KERNEL_OK")
</pallas_src>

<mosaic_0001>
module attributes {stable_mosaic.version = 11 : i64} {
  func.func @mlp_kernel(%arg0: memref<8x3xf32, #tpu.memory_space<vmem>>, %arg1: memref<3x128xf32, #tpu.memory_space<vmem>>, %arg2: memref<1x128xf32, #tpu.memory_space<vmem>>, %arg3: memref<128x3xf32, #tpu.memory_space<vmem>>, %arg4: memref<1x3xf32, #tpu.memory_space<vmem>>, %arg5: memref<8x3xf32, #tpu.memory_space<vmem>>) attributes {dimension_semantics = [], scalar_prefetch = 0 : i64, scratch_operands = 0 : i64, tpu.core_type = #tpu.core_type<tc>} {
    %c0 = arith.constant 0 : index
    %c0_0 = arith.constant 0 : index
    %0 = vector.load %arg0[%c0, %c0_0] : memref<8x3xf32, #tpu.memory_space<vmem>>, vector<8x3xf32>
    %c0_1 = arith.constant 0 : index
    %c0_2 = arith.constant 0 : index
    %1 = vector.load %arg1[%c0_1, %c0_2] : memref<3x128xf32, #tpu.memory_space<vmem>>, vector<3x128xf32>
    %cst = arith.constant dense<0.000000e+00> : vector<8x128xf32>
    %2 = tpu.matmul %0, %1, %cst {dimension_numbers = #tpu.dot_dimension_numbers<[1], [0], [0], [1], [0, 0, 1, 1], [], []>} : vector<8x3xf32>, vector<3x128xf32>, vector<8x128xf32> -> vector<8x128xf32>
    %c0_3 = arith.constant 0 : index
    %c0_4 = arith.constant 0 : index
    %3 = vector.load %arg2[%c0_3, %c0_4] : memref<1x128xf32, #tpu.memory_space<vmem>>, vector<1x128xf32>
    %4 = vector.broadcast %3 : vector<1x128xf32> to vector<8x128xf32>
    %5 = arith.addf %2, %4 : vector<8x128xf32>
    %cst_5 = arith.constant 0.000000e+00 : f32
    %6 = vector.broadcast %cst_5 : f32 to vector<8x128xf32>
    %7 = arith.maximumf %5, %6 : vector<8x128xf32>
    %c0_6 = arith.constant 0 : index
    %c0_7 = arith.constant 0 : index
    %8 = vector.load %arg3[%c0_6, %c0_7] : memref<128x3xf32, #tpu.memory_space<vmem>>, vector<128x3xf32>
    %cst_8 = arith.constant dense<0.000000e+00> : vector<8x3xf32>
    %9 = tpu.matmul %7, %8, %cst_8 {dimension_numbers = #tpu.dot_dimension_numbers<[1], [0], [0], [1], [0, 0, 1, 1], [], []>} : vector<8x128xf32>, vector<128x3xf32>, vector<8x3xf32> -> vector<8x3xf32>
    %c0_9 = arith.constant 0 : index
    %c0_10 = arith.constant 0 : index
    %10 = vector.load %arg4[%c0_9, %c0_10] : memref<1x3xf32, #tpu.memory_space<vmem>>, vector<1x3xf32>
    %11 = vector.broadcast %10 : vector<1x3xf32> to vector<8x3xf32>
    %12 = arith.addf %9, %11 : vector<8x3xf32>
    %c0_11 = arith.constant 0 : index
    %c0_12 = arith.constant 0 : index
    %13 = vector.load %arg5[%c0_11, %c0_12] : memref<8x3xf32, #tpu.memory_space<vmem>>, vector<8x3xf32>
    tpu.vector_store %arg5[%c0_11, %c0_12], %12 {strides = array<i32>} : memref<8x3xf32, #tpu.memory_space<vmem>>, vector<8x3xf32>,
    return
  }
}

</mosaic_0001>

<llo_original>
// kernel: tpu_custom_call.1
$region0: #{tpu_custom_call.1}
  #allocation0 [shape = 'u32[]', space=smem, size = 0x4, offset = 0x4, fixed_abs, tag = 'smem constant byte address 0x4 - core index']
  #allocation1 [shape = 'u32[144,128]{1,0:T(1,128)}', space=vmem, size = 0x12000, scoped, tag = 'internal scratch']
  %s0 = inlined_call_operand.vmem [shape: f32[8,3], index: 0, kind: input, shape index: {}]
  %s1 = inlined_call_operand.vmem [shape: f32[3,128], index: 1, kind: input, shape index: {}]
  %s2 = inlined_call_operand.vmem [shape: f32[1,128], index: 2, kind: input, shape index: {}]
  %s3 = inlined_call_operand.vmem [shape: f32[128,3], index: 3, kind: input, shape index: {}]
  %s4 = inlined_call_operand.vmem [shape: f32[1,3], index: 4, kind: input, shape index: {}]
  %s5 = inlined_call_operand.vmem [shape: f32[8,3], index: 5, kind: output, shape index: {}]
  %s6 = sld [smem:[#allocation0]]
  $region30: #{tpu_custom_call.1} parent=0
    _
  %s8 = ssub.s32 1, %s6
  %s9 = scalar_select 0, %s8, %s6
  // Predicated region
  $region2: #{tpu_custom_call.1} parent=0 // pred_check
    _
  $region3: #{tpu_custom_call.1} parent=0 // pred_check_branch
    %11 = sbr.rel (0) target = $region5
  $region4: #{tpu_custom_call.1} parent=0 // pred_region
    _
  $region5: #{tpu_custom_call.1} parent=0 // pred_fallthru
    _
  // Predicated region
  $region6: #{tpu_custom_call.1} parent=0 // pred_check
    _
  $region7: #{tpu_custom_call.1} parent=0 // pred_check_branch
    %13 = sbr.rel (0) target = $region9
  $region8: #{tpu_custom_call.1} parent=0 // pred_region
    _
  $region9: #{tpu_custom_call.1} parent=0 // pred_fallthru
    _
  // Predicated region
  $region10: #{tpu_custom_call.1} parent=0 // pred_check
    _
  $region11: #{tpu_custom_call.1} parent=0 // pred_check_branch
    %15 = sbr.rel (0) target = $region13
  $region12: #{tpu_custom_call.1} parent=0 // pred_region
    _
  $region13: #{tpu_custom_call.1} parent=0 // pred_fallthru
    _
  // Predicated region
  $region14: #{tpu_custom_call.1} parent=0 // pred_check
    _
  $region15: #{tpu_custom_call.1} parent=0 // pred_check_branch
    %17 = sbr.rel (0) target = $region17
  $region16: #{tpu_custom_call.1} parent=0 // pred_region
    _
  $region17: #{tpu_custom_call.1} parent=0 // pred_fallthru
    _
  // Predicated region
  $region18: #{tpu_custom_call.1} parent=0 // pred_check
    _
  $region19: #{tpu_custom_call.1} parent=0 // pred_check_branch
    %19 = sbr.rel (0) target = $region21
  $region20: #{tpu_custom_call.1} parent=0 // pred_region
    _
  $region21: #{tpu_custom_call.1} parent=0 // pred_fallthru
    _
  %v20 = vld [vmem:[%s0] sm:$0xff]
  %v21 = vld [vmem:[%s1] sm:$0x7]
  %v22 = vld [vmem:[%s2] sm:$0x1]
  %v24 = vlaneseq
  %v25 = vshrl.u32 %v24, 7
  %v26 = vsub.s32 0, %v25
  %v27 = vrot.slane %v22, %v26
  %vm29 = vcmask 23552
  %v31 = vsel %vm29, %v20, 0
  %vm33 = vcmask 1042432
  %v35 = vsel %vm33, %v21, 0
  %37 = vmatprep.subr.mxu0 0.0
  %38 = vmatpush1.msra.mxu0 0.0
  %39 = vmatprep.subr.mxu0 0.0
  %40 = vmatpush1.msra.mxu0 0.0
  %41 = vmatprep.subr.mxu0 0.0
  %42 = vmatpush1.msra.mxu0 0.0
  %43 = vmatprep.subr.mxu0 0.0
  %44 = vmatpush1.msra.mxu0 0.0
  %45 = vmatprep.subr.mxu0 0.0
  %46 = vmatpush1.msra.mxu0 0.0
  %47 = vmatprep.subr.mxu0 0.0
  %48 = vmatpush1.msra.mxu0 0.0
  %49 = vmatprep.subr.mxu0 0.0
  %50 = vmatpush1.msra.mxu0 0.0
  %51 = vmatprep.subr.mxu0 0.0
  %52 = vmatpush1.msra.mxu0 0.0
  %53 = vmatprep.subr.mxu0 0.0
  %54 = vmatpush1.msra.mxu0 0.0
  %55 = vmatprep.subr.mxu0 0.0
  %56 = vmatpush1.msra.mxu0 0.0
  %57 = vmatprep.subr.mxu0 0.0
  %58 = vmatpush1.msra.mxu0 0.0
  %59 = vmatprep.subr.mxu0 0.0
  %60 = vmatpush1.msra.mxu0 0.0
  %61 = vmatprep.subr.mxu0 0.0
  %62 = vmatpush1.msra.mxu0 0.0
  %63 = vmatprep.subr.mxu0 0.0
  %64 = vmatpush1.msra.mxu0 0.0
  %65 = vmatprep.subr.mxu0 0.0
  %66 = vmatpush1.msra.mxu0 0.0
  %67 = vmatprep.subr.mxu0 0.0
  %68 = vmatpush1.msra.mxu0 %v35
  %69 = vmatprep.subr.mxu0 0.0
  %70 = vmatpush2.msra.mxu0 0.0
  %71 = vmatprep.subr.mxu0 0.0
  %72 = vmatpush2.msra.mxu0 0.0
  %73 = vmatprep.subr.mxu0 0.0
  %74 = vmatpush2.msra.mxu0 0.0
  %75 = vmatprep.subr.mxu0 0.0
  %76 = vmatpush2.msra.mxu0 0.0
  %77 = vmatprep.subr.mxu0 0.0
  %78 = vmatpush2.msra.mxu0 0.0
  %79 = vmatprep.subr.mxu0 0.0
  %80 = vmatpush2.msra.mxu0 0.0
  %81 = vmatprep.subr.mxu0 0.0
  %82 = vmatpush2.msra.mxu0 0.0
  %83 = vmatprep.subr.mxu0 0.0
  %84 = vmatpush2.msra.mxu0 0.0
  %85 = vmatprep.subr.mxu0 0.0
  %86 = vmatpush2.msra.mxu0 0.0
  %87 = vmatprep.subr.mxu0 0.0
  %88 = vmatpush2.msra.mxu0 0.0
  %89 = vmatprep.subr.mxu0 0.0
  %90 = vmatpush2.msra.mxu0 0.0
  %91 = vmatprep.subr.mxu0 0.0
  %92 = vmatpush2.msra.mxu0 0.0
  %93 = vmatprep.subr.mxu0 0.0
  %94 = vmatpush2.msra.mxu0 0.0
  %95 = vmatprep.subr.mxu0 0.0
  %96 = vmatpush2.msra.mxu0 0.0
  %97 = vmatprep.subr.mxu0 0.0
  %98 = vmatpush2.msra.mxu0 0.0
  %99 = vmatprep.subr.mxu0 0.0
  %100 = vmatpush2.msra.mxu0 0.0
  %101 = vmatprep.mubr.f32.mxu0 0.0
  %102 = vmatmul.mubr.f32.gmra.mxu0 %v31
  %v103 = vpop.f32.mrf.mxu0
  %v104 = vadd.f32 %v27, %v103
  %v105 = vpop.f32.mrf.mxu0
  %106 = vdwg.mxu0
  %v107 = vmax.f32 %v104, 0.0
  %v108 = vld [vmem:[%s3] sm:$0xff]
  %v109 = vld [vmem:[%s3 + $0x8] sm:$0xff]
  %v110 = vld [vmem:[%s3 + $0x10] sm:$0xff]
  %v111 = vld [vmem:[%s3 + $0x18] sm:$0xff]
  %v112 = vld [vmem:[%s3 + $0x20] sm:$0xff]
  %v113 = vld [vmem:[%s3 + $0x28] sm:$0xff]
  %v114 = vld [vmem:[%s3 + $0x30] sm:$0xff]
  %v115 = vld [vmem:[%s3 + $0x38] sm:$0xff]
  %v116 = vld [vmem:[%s3 + $0x40] sm:$0xff]
  %v117 = vld [vmem:[%s3 + $0x48] sm:$0xff]
  %v118 = vld [vmem:[%s3 + $0x50] sm:$0xff]
  %v119 = vld [vmem:[%s3 + $0x58] sm:$0xff]
  %v120 = vld [vmem:[%s3 + $0x60] sm:$0xff]
  %v121 = vld [vmem:[%s3 + $0x68] sm:$0xff]
  %v122 = vld [vmem:[%s3 + $0x70] sm:$0xff]
  %v123 = vld [vmem:[%s3 + $0x78] sm:$0xff]
  %v124 = vld [vmem:[%s4] sm:$0x1]
  %v126 = vlaneseq
  %v127 = vshrl.u32 %v126, 7
  %v128 = vsub.s32 0, %v127
  %v129 = vrot.slane %v124, %v128
  %131 = vmatprep.subr.mxu0 0.0
  %132 = vmatpush1.msra.mxu0 %v123
  %133 = vmatprep.subr.mxu0 0.0
  %134 = vmatpush1.msra.mxu0 %v122
  %135 = vmatprep.subr.mxu0 0.0
  %136 = vmatpush1.msra.mxu0 %v121
  %137 = vmatprep.subr.mxu0 0.0
  %138 = vmatpush1.msra.mxu0 %v120
  %139 = vmatprep.subr.mxu0 0.0
  %140 = vmatpush1.msra.mxu0 %v119
  %141 = vmatprep.subr.mxu0 0.0
  %142 = vmatpush1.msra.mxu0 %v118
  %143 = vmatprep.subr.mxu0 0.0
  %144 = vmatpush1.msra.mxu0 %v117
  %145 = vmatprep.subr.mxu0 0.0
  %146 = vmatpush1.msra.mxu0 %v116
  %147 = vmatprep.subr.mxu0 0.0
  %148 = vmatpush1.msra.mxu0 %v115
  %149 = vmatprep.subr.mxu0 0.0
  %150 = vmatpush1.msra.mxu0 %v114
  %151 = vmatprep.subr.mxu0 0.0
  %152 = vmatpush1.msra.mxu0 %v113
  %153 = vmatprep.subr.mxu0 0.0
  %154 = vmatpush1.msra.mxu0 %v112
  %155 = vmatprep.subr.mxu0 0.0
  %156 = vmatpush1.msra.mxu0 %v111
  %157 = vmatprep.subr.mxu0 0.0
  %158 = vmatpush1.msra.mxu0 %v110
  %159 = vmatprep.subr.mxu0 0.0
  %160 = vmatpush1.msra.mxu0 %v109
  %161 = vmatprep.subr.mxu0 0.0
  %162 = vmatpush1.msra.mxu0 %v108
  %163 = vmatprep.subr.mxu0 0.0
  %164 = vmatpush2.msra.mxu0 0.0
  %165 = vmatprep.subr.mxu0 0.0
  %166 = vmatpush2.msra.mxu0 0.0
  %167 = vmatprep.subr.mxu0 0.0
  %168 = vmatpush2.msra.mxu0 0.0
  %169 = vmatprep.subr.mxu0 0.0
  %170 = vmatpush2.msra.mxu0 0.0
  %171 = vmatprep.subr.mxu0 0.0
  %172 = vmatpush2.msra.mxu0 0.0
  %173 = vmatprep.subr.mxu0 0.0
  %174 = vmatpush2.msra.mxu0 0.0
  %175 = vmatprep.subr.mxu0 0.0
  %176 = vmatpush2.msra.mxu0 0.0
  %177 = vmatprep.subr.mxu0 0.0
  %178 = vmatpush2.msra.mxu0 0.0
  %179 = vmatprep.subr.mxu0 0.0
  %180 = vmatpush2.msra.mxu0 0.0
  %181 = vmatprep.subr.mxu0 0.0
  %182 = vmatpush2.msra.mxu0 0.0
  %183 = vmatprep.subr.mxu0 0.0
  %184 = vmatpush2.msra.mxu0 0.0
  %185 = vmatprep.subr.mxu0 0.0
  %186 = vmatpush2.msra.mxu0 0.0
  %187 = vmatprep.subr.mxu0 0.0
  %188 = vmatpush2.msra.mxu0 0.0
  %189 = vmatprep.subr.mxu0 0.0
  %190 = vmatpush2.msra.mxu0 0.0
  %191 = vmatprep.subr.mxu0 0.0
  %192 = vmatpush2.msra.mxu0 0.0
  %193 = vmatprep.subr.mxu0 0.0
  %194 = vmatpush2.msra.mxu0 0.0
  %195 = vmatprep.mubr.f32.mxu0 0.0
  %196 = vmatmul.mubr.f32.gmra.mxu0 %v107
  %v197 = vpop.f32.mrf.mxu0
  %v198 = vadd.f32 %v129, %v197
  %v199 = vpop.f32.mrf.mxu0
  %200 = vdwg.mxu0
  %201 = vst.msk [vmem:[%s5] sm:$0xff] %vm29, %v198
  // Predicated region
  $region22: #{tpu_custom_call.1} parent=0 // pred_check
    _
  $region23: #{tpu_custom_call.1} parent=0 // pred_check_branch
    %203 = sbr.rel (0) target = $region25
  $region24: #{tpu_custom_call.1} parent=0 // pred_region
    _
  $region25: #{tpu_custom_call.1} parent=0 // pred_fallthru
    _
  // Predicated region
  $region26: #{tpu_custom_call.1} parent=0 // pred_check
    _
  $region27: #{tpu_custom_call.1} parent=0 // pred_check_branch
    %205 = sbr.rel (0) target = $region29
  $region28: #{tpu_custom_call.1} parent=0 // pred_region
    _
  $region29: #{tpu_custom_call.1} parent=0 // pred_fallthru
    _

</llo_original>
